<compile_context>
chip_gen: v5e
topology: v5e:2x2
jax: 0.10.0
libtpu: 0.0.40
codegen_flags: <defaults>
</compile_context>

<pallas_src>
import functools

import jax
import jax.numpy as jnp
from jax.experimental import pallas as pl
from jax.experimental.pallas import tpu as pltpu


def _round_up(x, m):
    return (x + m - 1) // m * m


# ----------------------------------------------------------------------------
# Pallas kernel 1: single-pass matmul with VMEM-resident weights.
#   out = A @ W  (W already has BN scale folded in)  + bias (+res) (+ReLU)
# ----------------------------------------------------------------------------
def _matmul_bias_kernel(*refs, relu, has_res):
    if has_res:
        a_ref, w_ref, b_ref, r_ref, o_ref = refs
    else:
        a_ref, w_ref, b_ref, o_ref = refs
        r_ref = None
    out = jnp.dot(a_ref[...], w_ref[...], preferred_element_type=jnp.float32)
    out = out + b_ref[...]
    if has_res:
        out = out + r_ref[...].astype(jnp.float32)
    if relu:
        out = jnp.maximum(out, 0.0)
    o_ref[...] = out.astype(o_ref.dtype)


def matmul_bias(A, Wm, bias, relu, residual=None, n_valid=None,
                out_dtype=jnp.bfloat16):
    """(M,K) @ pre-packed (Kp,Np) bf16 weight + bias[1,Np] (+res) (+ReLU)."""
    M, K = A.shape
    Kp, Np = Wm.shape
    n_valid = Np if n_valid is None else n_valid

    # M tile: whole M when small (single grid step), capped at 512 rows.
    tm = min(512, _round_up(M, 8))
    Mp = _round_up(M, tm)
    m_tiles = Mp // tm

    # If M gives only one tile, split N in two so both v7x TensorCores work.
    if m_tiles < 2 and Np % 256 == 0:
        tn = Np // 2
    else:
        tn = Np
    n_tiles = Np // tn

    Ap = jnp.pad(A, ((0, Mp - M), (0, Kp - K))).astype(jnp.bfloat16)

    inputs = [Ap, Wm, bias]
    in_specs = [
        pl.BlockSpec((tm, Kp), lambda i, j: (i, 0)),   # A tile, full K
        pl.BlockSpec((Kp, tn), lambda i, j: (0, j)),   # resident weight slab
        pl.BlockSpec((1, tn), lambda i, j: (0, j)),    # bias
    ]
    has_res = residual is not None
    if has_res:
        Rp = jnp.pad(residual,
                     ((0, Mp - M), (0, Np - residual.shape[1]))
                     ).astype(jnp.bfloat16)
        inputs.append(Rp)
        in_specs.append(pl.BlockSpec((tm, tn), lambda i, j: (i, j)))

    out = pl.pallas_call(
        functools.partial(_matmul_bias_kernel, relu=relu, has_res=has_res),
        out_shape=jax.ShapeDtypeStruct((Mp, Np), out_dtype),
        grid=(m_tiles, n_tiles),
        in_specs=in_specs,
        out_specs=pl.BlockSpec((tm, tn), lambda i, j: (i, j)),
        compiler_params=pltpu.CompilerParams(
            dimension_semantics=("parallel", "parallel"),
            # Working set <= ~16 MiB; keep the cap below v7x's 64 MiB VMEM.
            vmem_limit_bytes=48 * 1024 * 1024),
    )(*inputs)
    return out[:M, :n_valid]


def conv2d_bn_act(x, p, stride, padding, relu, residual=None):
    """NHWC conv2d with pre-packed (BN-folded) weights + optional res/ReLU.

    x: (B, H, W, C) bf16.  p: packed param dict.  Returns (B, OH, OW, OC) bf16.
    """
    B, H, W, C = x.shape
    KH = KW = p["k"]
    OC = p["oc"]
    OH = (H + 2 * padding - KH) // stride + 1
    OW = (W + 2 * padding - KW) // stride + 1

    if KH == 1 and KW == 1 and padding == 0:
        xs = x[:, ::stride, ::stride, :] if stride > 1 else x
        A = xs.reshape(B * OH * OW, C)
    else:
        xp = jnp.pad(x, ((0, 0), (padding, padding), (padding, padding), (0, 0)))
        cols = [xp[:, kh::stride, kw::stride, :][:, :OH, :OW, :]
                for kh in range(KH) for kw in range(KW)]
        A = jnp.concatenate(cols, axis=-1).reshape(B * OH * OW, KH * KW * C)

    res2 = None if residual is None else residual.reshape(B * OH * OW, OC)
    out = matmul_bias(A, p["wm"], p["bias"], relu, residual=res2, n_valid=OC)
    return out.reshape(B, OH, OW, OC)


# ----------------------------------------------------------------------------
# Pallas kernel 2: 3x3 stride-2 pad-1 max pool.
#   Padded input is split once into even/odd row/column quadrants on the host
#   (each element copied once); the 9 window maxima use unit-stride in-kernel
#   slices -> no 9x HBM window materialization.
# ----------------------------------------------------------------------------
def _maxpool_kernel(ee_ref, eo_ref, oe_ref, oo_ref, o_ref, *, OH, OW):
    EE = ee_ref[...]
    EO = eo_ref[...]
    OE = oe_ref[...]
    OO = oo_ref[...]

    def win(a, dh, dw):
        return a[:, dh:dh + OH, dw:dw + OW, :]

    m = win(EE, 0, 0)                       # (kh=0, kw=0)
    m = jnp.maximum(m, win(EO, 0, 0))       # (0, 1)
    m = jnp.maximum(m, win(EE, 0, 1))       # (0, 2)
    m = jnp.maximum(m, win(OE, 0, 0))       # (1, 0)
    m = jnp.maximum(m, win(OO, 0, 0))       # (1, 1)
    m = jnp.maximum(m, win(OE, 0, 1))       # (1, 2)
    m = jnp.maximum(m, win(EE, 1, 0))       # (2, 0)
    m = jnp.maximum(m, win(EO, 1, 0))       # (2, 1)
    m = jnp.maximum(m, win(EE, 1, 1))       # (2, 2)
    o_ref[...] = m


def maxpool3x3s2p1(x):
    """x: (B, H, W, C) NHWC -> (B, OH, OW, C)."""
    B, H, W, C = x.shape
    OH = (H + 2 - 3) // 2 + 1
    OW = (W + 2 - 3) // 2 + 1
    # Pad by 1 with -inf, then to an even padded extent for the even/odd split.
    ph = (H + 2) % 2
    pw = (W + 2) % 2
    xp = jnp.pad(x, ((0, 0), (1, 1 + ph), (1, 1 + pw), (0, 0)),
                 constant_values=-jnp.inf)
    ee = xp[:, 0::2, 0::2, :]
    eo = xp[:, 0::2, 1::2, :]
    oe = xp[:, 1::2, 0::2, :]
    oo = xp[:, 1::2, 1::2, :]
    Bq, He, We, Cq = ee.shape

    out = pl.pallas_call(
        functools.partial(_maxpool_kernel, OH=OH, OW=OW),
        out_shape=jax.ShapeDtypeStruct((B, OH, OW, C), x.dtype),
        grid=(1,),
        in_specs=[pl.BlockSpec((Bq, He, We, Cq), lambda i: (0, 0, 0, 0))] * 4,
        out_specs=pl.BlockSpec((B, OH, OW, C), lambda i: (0, 0, 0, 0)),
    )(ee, eo, oe, oo)
    return out


# ----------------------------------------------------------------------------
# Pallas kernel 3: global average pool (AdaptiveAvgPool2d((1,1))), gridded
# ----------------------------------------------------------------------------
def _avgpool_kernel(x_ref, o_ref, *, denom):
    @pl.when(pl.program_id(0) == 0)
    def _():
        o_ref[...] = jnp.zeros_like(o_ref)

    o_ref[...] += jnp.sum(x_ref[...].astype(jnp.float32), axis=1)

    @pl.when(pl.program_id(0) == pl.num_programs(0) - 1)
    def _():
        o_ref[...] = o_ref[...] * (1.0 / denom)


def global_avgpool(x):
    """x: (B, H, W, C) NHWC -> (B, C) float32."""
    B, H, W, C = x.shape
    S = H * W
    x2 = x.reshape(B, S, C)
    ts = min(64, _round_up(S, 8))
    Sp = _round_up(S, ts)
    x2 = jnp.pad(x2, ((0, 0), (0, Sp - S), (0, 0)))
    out = pl.pallas_call(
        functools.partial(_avgpool_kernel, denom=float(S)),
        out_shape=jax.ShapeDtypeStruct((B, C), jnp.float32),
        grid=(Sp // ts,),
        in_specs=[pl.BlockSpec((B, ts, C), lambda s: (0, s, 0))],
        out_specs=pl.BlockSpec((B, C), lambda s: (0, 0)),
        compiler_params=pltpu.CompilerParams(
            dimension_semantics=("arbitrary",)),
    )(x2)
    return out


# ----------------------------------------------------------------------------
# ResNet-50 parameters: deterministic synthetic init, BN folded and weights
# pre-packed (transposed to (K,N), scale folded into columns, padded, bf16).
# ----------------------------------------------------------------------------
def make_conv_bn_params(key, in_c, out_c, k):
    k1, k2, k3, k4, k5 = jax.random.split(key, 5)
    fan_in = in_c * k * k
    w = jax.random.normal(k1, (out_c, in_c, k, k), jnp.float32) * (2.0 / fan_in) ** 0.5
    gamma = jax.random.uniform(k2, (out_c,), jnp.float32, 0.8, 1.2)
    beta = jax.random.normal(k3, (out_c,), jnp.float32) * 0.05
    mean = jax.random.normal(k4, (out_c,), jnp.float32) * 0.05
    var = jax.random.uniform(k5, (out_c,), jnp.float32, 0.8, 1.2)
    eps = 1e-5
    scale = gamma / jnp.sqrt(var + eps)
    bias = beta - mean * scale

    K = in_c * k * k
    Kp = _round_up(K, 128)
    Np = _round_up(out_c, 128)
    # (OC, C, KH, KW) -> (KH, KW, C, OC) -> (K, OC); fold BN scale into columns.
    wm = jnp.transpose(w, (2, 3, 1, 0)).reshape(K, out_c) * scale[None, :]
    wm = jnp.pad(wm, ((0, Kp - K), (0, Np - out_c))).astype(jnp.bfloat16)
    bias_p = jnp.pad(bias, (0, Np - out_c)).reshape(1, Np).astype(jnp.float32)
    return {"wm": wm, "bias": bias_p, "k": k, "oc": out_c}


def build_resnet50_params(key):
    keys = iter(jax.random.split(key, 256))
    params = {"conv1": make_conv_bn_params(next(keys), 3, 64, 7), "layers": []}
    layers_cfg = [(64, 3, 1), (128, 4, 2), (256, 6, 2), (512, 3, 2)]
    in_c = 64
    for planes, nblocks, stride in layers_cfg:
        blocks = []
        for b in range(nblocks):
            s = stride if b == 0 else 1
            blk = {
                "conv1": make_conv_bn_params(next(keys), in_c, planes, 1),
                "conv2": make_conv_bn_params(next(keys), planes, planes, 3),
                "conv3": make_conv_bn_params(next(keys), planes, planes * 4, 1),
                "stride": s,
            }
            if s != 1 or in_c != planes * 4:
                blk["down"] = make_conv_bn_params(next(keys), in_c, planes * 4, 1)
            blocks.append(blk)
            in_c = planes * 4
        params["layers"].append(blocks)
    return params


def resbase_forward(params, x):
    """ResBase.forward: features(x) then view(B, 2048).  x is NCHW f32."""
    # Single boundary transpose + bf16 cast; NHWC bf16 internally.
    x = jnp.transpose(x, (0, 2, 3, 1)).astype(jnp.bfloat16)

    x = conv2d_bn_act(x, params["conv1"], stride=2, padding=3, relu=True)
    x = maxpool3x3s2p1(x)

    for blocks in params["layers"]:
        for blk in blocks:
            s = blk["stride"]
            if "down" in blk:
                identity = conv2d_bn_act(x, blk["down"], stride=s, padding=0,
                                         relu=False)
            else:
                identity = x
            out = conv2d_bn_act(x, blk["conv1"], stride=1, padding=0, relu=True)
            out = conv2d_bn_act(out, blk["conv2"], stride=s, padding=1, relu=True)
            # conv3: BN + residual add + ReLU fused into the matmul epilogue.
            x = conv2d_bn_act(out, blk["conv3"], stride=1, padding=0, relu=True,
                              residual=identity)

    x = global_avgpool(x)                  # (B, 2048) f32 == AdaptiveAvgPool + view
    return x.reshape(x.shape[0], 2048)


if __name__ == "__main__":
    key = jax.random.PRNGKey(0)
    pkey, xkey = jax.random.split(key)
    params = build_resnet50_params(pkey)
    # Small input consistent with the module: NCHW, 3 input channels.
    x = jax.random.normal(xkey, (2, 3, 32, 32), jnp.float32)
    out = resbase_forward(params, x)
    out = jax.block_until_ready(out)
    assert out.shape == (2, 2048), out.shape
    assert bool(jnp.isfinite(out).all())
    print("KERNEL_OK")
</pallas_src>

<mosaic_0001>
module attributes {stable_mosaic.version = 11 : i64} {
  func.func @_matmul_bias_kernel(%arg0: i32, %arg1: i32, %arg2: memref<512x256xbf16, #tpu.memory_space<vmem>>, %arg3: memref<256x128xbf16, #tpu.memory_space<vmem>>, %arg4: memref<1x128xf32, #tpu.memory_space<vmem>>, %arg5: memref<512x128xbf16, #tpu.memory_space<vmem>>) attributes {dimension_semantics = [#tpu.dimension_semantics<parallel>, #tpu.dimension_semantics<parallel>], iteration_bounds = array<i64: 1, 1>, scalar_prefetch = 0 : i64, scratch_operands = 0 : i64, tpu.core_type = #tpu.core_type<tc>, window_params = [{transform_indices = @transform_0, window_bounds = array<i64: 512, 256>}, {transform_indices = @transform_1, window_bounds = array<i64: 256, 128>}, {transform_indices = @transform_2, window_bounds = array<i64: 1, 128>}, {transform_indices = @transform_3, window_bounds = array<i64: 512, 128>}]} {
    %c0 = arith.constant 0 : index
    %c0_0 = arith.constant 0 : index
    %0 = vector.load %arg2[%c0, %c0_0] : memref<512x256xbf16, #tpu.memory_space<vmem>>, vector<512x256xbf16>
    %c0_1 = arith.constant 0 : index
    %c0_2 = arith.constant 0 : index
    %1 = vector.load %arg3[%c0_1, %c0_2] : memref<256x128xbf16, #tpu.memory_space<vmem>>, vector<256x128xbf16>
    %cst = arith.constant dense<0.000000e+00> : vector<512x128xf32>
    %2 = tpu.matmul %0, %1, %cst {dimension_numbers = #tpu.dot_dimension_numbers<[1], [0], [0], [1], [0, 0, 1, 1], [], []>} : vector<512x256xbf16>, vector<256x128xbf16>, vector<512x128xf32> -> vector<512x128xf32>
    %c0_3 = arith.constant 0 : index
    %c0_4 = arith.constant 0 : index
    %3 = vector.load %arg4[%c0_3, %c0_4] : memref<1x128xf32, #tpu.memory_space<vmem>>, vector<1x128xf32>
    %4 = vector.broadcast %3 : vector<1x128xf32> to vector<512x128xf32>
    %5 = arith.addf %2, %4 : vector<512x128xf32>
    %cst_5 = arith.constant 0.000000e+00 : f32
    %6 = vector.broadcast %cst_5 : f32 to vector<512x128xf32>
    %7 = arith.maximumf %5, %6 : vector<512x128xf32>
    %8 = arith.truncf %7 : vector<512x128xf32> to vector<512x128xbf16>
    %c0_6 = arith.constant 0 : index
    %c0_7 = arith.constant 0 : index
    %9 = vector.load %arg5[%c0_6, %c0_7] : memref<512x128xbf16, #tpu.memory_space<vmem>>, vector<512x128xbf16>
    tpu.vector_store %arg5[%c0_6, %c0_7], %8 {strides = array<i32>} : memref<512x128xbf16, #tpu.memory_space<vmem>>, vector<512x128xbf16>,
    return
  }
  func.func @transform_0(%arg0: i32, %arg1: i32) -> (i32, i32) {
    %c0_i32 = arith.constant 0 : i32
    %c0_i32_0 = arith.constant 0 : i32
    return %arg0, %c0_i32 : i32, i32
  }
  func.func @transform_1(%arg0: i32, %arg1: i32) -> (i32, i32) {
    %c0_i32 = arith.constant 0 : i32
    %c0_i32_0 = arith.constant 0 : i32
    return %c0_i32, %arg1 : i32, i32
  }
  func.func @transform_2(%arg0: i32, %arg1: i32) -> (i32, i32) {
    %c0_i32 = arith.constant 0 : i32
    %c0_i32_0 = arith.constant 0 : i32
    return %c0_i32, %arg1 : i32, i32
  }
  func.func @transform_3(%arg0: i32, %arg1: i32) -> (i32, i32) {
    %c0_i32 = arith.constant 0 : i32
    return %arg0, %arg1 : i32, i32
  }
}

</mosaic_0001>

<llo_original>
// kernel: tpu_custom_call.1
$region0: #{tpu_custom_call.1}
  #allocation0 [shape = 'u32[]', space=smem, size = 0x4, offset = 0x4, fixed_abs, tag = 'smem constant byte address 0x4 - core index']
  #allocation1 [shape = 'u32[72,128]{1,0:T(1,128)}', space=vmem, size = 0x9000, scoped, tag = 'internal scratch']
  %s0 = inlined_call_operand.hbm [shape: bf16[512,256], index: 0, kind: input, shape index: {}]
  %s1 = inlined_call_operand.hbm [shape: bf16[256,128], index: 1, kind: input, shape index: {}]
  %s2 = inlined_call_operand.vmem [shape: f32[1,128], index: 2, kind: input, shape index: {}]
  %s3 = inlined_call_operand.hbm [shape: bf16[512,128], index: 3, kind: output, shape index: {}]
  %s4 = sld [smem:[#allocation0]]
  $region30: #{tpu_custom_call.1} parent=0
    _
  %s6 = ssub.s32 1, %s4
  %s7 = scalar_select 0, %s6, %s4
  $region1: #{tpu_custom_call.1} parent=0
    #allocation2 [shape = 'u8[262144]{0}', space=vmem, size = 0x40000, scoped, tag = 'input window, operand 0, single buffered']
    #allocation3 [shape = 's32[1]{0}', space=sflag, size = 0x4, scoped, tag = 'scoped memory for tpu_custom_call.1']
    #allocation4 [shape = 's32[1]{0}', space=sflag, size = 0x4, scoped, tag = 'scoped memory for tpu_custom_call.1']
    #allocation5 [shape = 'u8[65536]{0}', space=vmem, size = 0x10000, scoped, tag = 'input window, operand 1, single buffered']
    #allocation6 [shape = 's32[1]{0}', space=sflag, size = 0x4, scoped, tag = 'scoped memory for tpu_custom_call.1']
    #allocation7 [shape = 'u8[131072]{0}', space=vmem, size = 0x20000, scoped, tag = 'output window, operand 0, single buffered']
    %8 = vsyncpa [#allocation3], 0
    %9 = vsyncpa [#allocation6], 0
    %10 = vsyncpa [#allocation4], 0
    // Predicated region
    $region2: #{tpu_custom_call.1} parent=1 // pred_check
      _
    $region3: #{tpu_custom_call.1} parent=1 // pred_check_branch
      %12 = sbr.rel (0) target = $region5
    $region4: #{tpu_custom_call.1} parent=1 // pred_region
      %14 = vsyncadd [#allocation3], 0
      %s15 = sshll.u32 %s0, 4
      %s16 = int_to_ptr.hbm [resolvable:$true] %s15
      %s17 = sshll.u32 [#allocation2], 4
      %s18 = int_to_ptr.vmem [resolvable:$true] %s17
      %23 = dma.hbm_to_vmem [thread:$0]  %s16, 8192, %s18, [#allocation3], 128, 128, 8
    $region5: #{tpu_custom_call.1} parent=1 // pred_fallthru
      _
    // Predicated region
    $region6: #{tpu_custom_call.1} parent=1 // pred_check
      _
    $region7: #{tpu_custom_call.1} parent=1 // pred_check_branch
      %25 = sbr.rel (0) target = $region9
    $region8: #{tpu_custom_call.1} parent=1 // pred_region
      %27 = vsyncadd [#allocation6], 0
      %s28 = sshll.u32 %s1, 4
      %s29 = int_to_ptr.hbm [resolvable:$true] %s28
      %s30 = sshll.u32 [#allocation5], 4
      %s31 = int_to_ptr.vmem [resolvable:$true] %s30
      %36 = dma.hbm_to_vmem [thread:$0]  %s29, 2048, %s31, [#allocation6], 64, 64, 4
    $region9: #{tpu_custom_call.1} parent=1 // pred_fallthru
      _
    // Predicated region
    $region10: #{tpu_custom_call.1} parent=1 // pred_check
      _
    $region11: #{tpu_custom_call.1} parent=1 // pred_check_branch
      %38 = sbr.rel (0) target = $region13
    $region12: #{tpu_custom_call.1} parent=1 // pred_region
      _
    $region13: #{tpu_custom_call.1} parent=1 // pred_fallthru
      _
    // Predicated region
    $region14: #{tpu_custom_call.1} parent=1 // pred_check
      _
    $region15: #{tpu_custom_call.1} parent=1 // pred_check_branch
      %40 = sbr.rel (0) target = $region17
    $region16: #{tpu_custom_call.1} parent=1 // pred_region
      %42 = dma.done [#allocation3], 8192
    $region17: #{tpu_custom_call.1} parent=1 // pred_fallthru
      _
    // Predicated region
    $region18: #{tpu_custom_call.1} parent=1 // pred_check
      _
    $region19: #{tpu_custom_call.1} parent=1 // pred_check_branch
      %44 = sbr.rel (0) target = $region21
    $region20: #{tpu_custom_call.1} parent=1 // pred_region
      %46 = dma.done [#allocation6], 2048
    $region21: #{tpu_custom_call.1} parent=1 // pred_fallthru
      _
    %v47 = vld [vmem:[#allocation2] sm:$0xff]
    %v48 = vld [vmem:[#allocation2 + $0x8] sm:$0xff]
    %v49 = vld [vmem:[#allocation2 + $0x10] sm:$0xff]
    %v50 = vld [vmem:[#allocation2 + $0x18] sm:$0xff]
    %v51 = vld [vmem:[#allocation2 + $0x20] sm:$0xff]
    %v52 = vld [vmem:[#allocation2 + $0x28] sm:$0xff]
    %v53 = vld [vmem:[#allocation2 + $0x30] sm:$0xff]
    %v54 = vld [vmem:[#allocation2 + $0x38] sm:$0xff]
    %v55 = vld [vmem:[#allocation2 + $0x40] sm:$0xff]
    %v56 = vld [vmem:[#allocation2 + $0x48] sm:$0xff]
    %v57 = vld [vmem:[#allocation2 + $0x50] sm:$0xff]
    %v58 = vld [vmem:[#allocation2 + $0x58] sm:$0xff]
    %v59 = vld [vmem:[#allocation2 + $0x60] sm:$0xff]
    %v60 = vld [vmem:[#allocation2 + $0x68] sm:$0xff]
    %v61 = vld [vmem:[#allocation2 + $0x70] sm:$0xff]
    %v62 = vld [vmem:[#allocation2 + $0x78] sm:$0xff]
    %v63 = vld [vmem:[#allocation2 + $0x80] sm:$0xff]
    %v64 = vld [vmem:[#allocation2 + $0x88] sm:$0xff]
    %v65 = vld [vmem:[#allocation2 + $0x90] sm:$0xff]
    %v66 = vld [vmem:[#allocation2 + $0x98] sm:$0xff]
    %v67 = vld [vmem:[#allocation2 + $0xa0] sm:$0xff]
    %v68 = vld [vmem:[#allocation2 + $0xa8] sm:$0xff]
    %v69 = vld [vmem:[#allocation2 + $0xb0] sm:$0xff]
    %v70 = vld [vmem:[#allocation2 + $0xb8] sm:$0xff]
    %v71 = vld [vmem:[#allocation2 + $0xc0] sm:$0xff]
    %v72 = vld [vmem:[#allocation2 + $0xc8] sm:$0xff]
    %v73 = vld [vmem:[#allocation2 + $0xd0] sm:$0xff]
    %v74 = vld [vmem:[#allocation2 + $0xd8] sm:$0xff]
    %v75 = vld [vmem:[#allocation2 + $0xe0] sm:$0xff]
    %v76 = vld [vmem:[#allocation2 + $0xe8] sm:$0xff]
    %v77 = vld [vmem:[#allocation2 + $0xf0] sm:$0xff]
    %v78 = vld [vmem:[#allocation2 + $0xf8] sm:$0xff]
    %v79 = vld [vmem:[#allocation2 + $0x100] sm:$0xff]
    %v80 = vld [vmem:[#allocation2 + $0x108] sm:$0xff]
    %v81 = vld [vmem:[#allocation2 + $0x110] sm:$0xff]
    %v82 = vld [vmem:[#allocation2 + $0x118] sm:$0xff]
    %v83 = vld [vmem:[#allocation2 + $0x120] sm:$0xff]
    %v84 = vld [vmem:[#allocation2 + $0x128] sm:$0xff]
    %v85 = vld [vmem:[#allocation2 + $0x130] sm:$0xff]
    %v86 = vld [vmem:[#allocation2 + $0x138] sm:$0xff]
    %v87 = vld [vmem:[#allocation2 + $0x140] sm:$0xff]
    %v88 = vld [vmem:[#allocation2 + $0x148] sm:$0xff]
    %v89 = vld [vmem:[#allocation2 + $0x150] sm:$0xff]
    %v90 = vld [vmem:[#allocation2 + $0x158] sm:$0xff]
    %v91 = vld [vmem:[#allocation2 + $0x160] sm:$0xff]
    %v92 = vld [vmem:[#allocation2 + $0x168] sm:$0xff]
    %v93 = vld [vmem:[#allocation2 + $0x170] sm:$0xff]
    %v94 = vld [vmem:[#allocation2 + $0x178] sm:$0xff]
    %v95 = vld [vmem:[#allocation2 + $0x180] sm:$0xff]
    %v96 = vld [vmem:[#allocation2 + $0x188] sm:$0xff]
    %v97 = vld [vmem:[#allocation2 + $0x190] sm:$0xff]
    %v98 = vld [vmem:[#allocation2 + $0x198] sm:$0xff]
    %v99 = vld [vmem:[#allocation2 + $0x1a0] sm:$0xff]
    %v100 = vld [vmem:[#allocation2 + $0x1a8] sm:$0xff]
    %v101 = vld [vmem:[#allocation2 + $0x1b0] sm:$0xff]
    %v102 = vld [vmem:[#allocation2 + $0x1b8] sm:$0xff]
    %v103 = vld [vmem:[#allocation2 + $0x1c0] sm:$0xff]
    %v104 = vld [vmem:[#allocation2 + $0x1c8] sm:$0xff]
    %v105 = vld [vmem:[#allocation2 + $0x1d0] sm:$0xff]
    %v106 = vld [vmem:[#allocation2 + $0x1d8] sm:$0xff]
    %v107 = vld [vmem:[#allocation2 + $0x1e0] sm:$0xff]
    %v108 = vld [vmem:[#allocation2 + $0x1e8] sm:$0xff]
    %v109 = vld [vmem:[#allocation2 + $0x1f0] sm:$0xff]
    %v110 = vld [vmem:[#allocation2 + $0x1f8] sm:$0xff]
    %v111 = vld [vmem:[#allocation5] sm:$0xf]
    %v112 = vld [vmem:[#allocation5 + $0x4] sm:$0xf]
    %v113 = vld [vmem:[#allocation5 + $0x8] sm:$0xf]
    %v114 = vld [vmem:[#allocation5 + $0xc] sm:$0xf]
    %v115 = vld [vmem:[#allocation5 + $0x10] sm:$0xf]
    %v116 = vld [vmem:[#allocation5 + $0x14] sm:$0xf]
    %v117 = vld [vmem:[#allocation5 + $0x18] sm:$0xf]
    %v118 = vld [vmem:[#allocation5 + $0x1c] sm:$0xf]
    %v119 = vld [vmem:[#allocation5 + $0x20] sm:$0xf]
    %v120 = vld [vmem:[#allocation5 + $0x24] sm:$0xf]
    %v121 = vld [vmem:[#allocation5 + $0x28] sm:$0xf]
    %v122 = vld [vmem:[#allocation5 + $0x2c] sm:$0xf]
    %v123 = vld [vmem:[#allocation5 + $0x30] sm:$0xf]
    %v124 = vld [vmem:[#allocation5 + $0x34] sm:$0xf]
    %v125 = vld [vmem:[#allocation5 + $0x38] sm:$0xf]
    %v126 = vld [vmem:[#allocation5 + $0x3c] sm:$0xf]
    %v127 = vld [vmem:[#allocation5 + $0x40] sm:$0xf]
    %v128 = vld [vmem:[#allocation5 + $0x44] sm:$0xf]
    %v129 = vld [vmem:[#allocation5 + $0x48] sm:$0xf]
    %v130 = vld [vmem:[#allocation5 + $0x4c] sm:$0xf]
    %v131 = vld [vmem:[#allocation5 + $0x50] sm:$0xf]
    %v132 = vld [vmem:[#allocation5 + $0x54] sm:$0xf]
    %v133 = vld [vmem:[#allocation5 + $0x58] sm:$0xf]
    %v134 = vld [vmem:[#allocation5 + $0x5c] sm:$0xf]
    %v135 = vld [vmem:[#allocation5 + $0x60] sm:$0xf]
    %v136 = vld [vmem:[#allocation5 + $0x64] sm:$0xf]
    %v137 = vld [vmem:[#allocation5 + $0x68] sm:$0xf]
    %v138 = vld [vmem:[#allocation5 + $0x6c] sm:$0xf]
    %v139 = vld [vmem:[#allocation5 + $0x70] sm:$0xf]
    %v140 = vld [vmem:[#allocation5 + $0x74] sm:$0xf]
    %v141 = vld [vmem:[#allocation5 + $0x78] sm:$0xf]
    %v142 = vld [vmem:[#allocation5 + $0x7c] sm:$0xf]
    %v143 = vld [vmem:[%s2] sm:$0x1]
    %v145 = vperm.slane %v143, 0
    %v211 = vunpack.c.l.b16 %v47
    %v212 = vunpack.c.h.b16 %v47
    %v213 = vunpack.c.l.b16 %v48
    %v214 = vunpack.c.h.b16 %v48
    %v215 = vunpack.c.l.b16 %v49
    %v216 = vunpack.c.h.b16 %v49
    %v217 = vunpack.c.l.b16 %v50
    %v218 = vunpack.c.h.b16 %v50
    %v219 = vunpack.c.l.b16 %v51
    %v220 = vunpack.c.h.b16 %v51
    %v221 = vunpack.c.l.b16 %v52
    %v222 = vunpack.c.h.b16 %v52
    %v223 = vunpack.c.l.b16 %v53
    %v224 = vunpack.c.h.b16 %v53
    %v225 = vunpack.c.l.b16 %v54
    %v226 = vunpack.c.h.b16 %v54
    %v227 = vunpack.c.l.b16 %v55
    %v228 = vunpack.c.h.b16 %v55
    %v229 = vunpack.c.l.b16 %v56
    %v230 = vunpack.c.h.b16 %v56
    %v231 = vunpack.c.l.b16 %v57
    %v232 = vunpack.c.h.b16 %v57
    %v233 = vunpack.c.l.b16 %v58
    %v234 = vunpack.c.h.b16 %v58
    %v235 = vunpack.c.l.b16 %v59
    %v236 = vunpack.c.h.b16 %v59
    %v237 = vunpack.c.l.b16 %v60
    %v238 = vunpack.c.h.b16 %v60
    %v239 = vunpack.c.l.b16 %v61
    %v240 = vunpack.c.h.b16 %v61
    %v241 = vunpack.c.l.b16 %v62
    %v242 = vunpack.c.h.b16 %v62
    %v243 = vunpack.c.l.b16 %v63
    %v244 = vunpack.c.h.b16 %v63
    %v245 = vunpack.c.l.b16 %v64
    %v246 = vunpack.c.h.b16 %v64
    %v247 = vunpack.c.l.b16 %v65
    %v248 = vunpack.c.h.b16 %v65
    %v249 = vunpack.c.l.b16 %v66
    %v250 = vunpack.c.h.b16 %v66
    %v251 = vunpack.c.l.b16 %v67
    %v252 = vunpack.c.h.b16 %v67
    %v253 = vunpack.c.l.b16 %v68
    %v254 = vunpack.c.h.b16 %v68
    %v255 = vunpack.c.l.b16 %v69
    %v256 = vunpack.c.h.b16 %v69
    %v257 = vunpack.c.l.b16 %v70
    %v258 = vunpack.c.h.b16 %v70
    %v259 = vunpack.c.l.b16 %v71
    %v260 = vunpack.c.h.b16 %v71
    %v261 = vunpack.c.l.b16 %v72
    %v262 = vunpack.c.h.b16 %v72
    %v263 = vunpack.c.l.b16 %v73
    %v264 = vunpack.c.h.b16 %v73
    %v265 = vunpack.c.l.b16 %v74
    %v266 = vunpack.c.h.b16 %v74
    %v267 = vunpack.c.l.b16 %v75
    %v268 = vunpack.c.h.b16 %v75
    %v269 = vunpack.c.l.b16 %v76
    %v270 = vunpack.c.h.b16 %v76
    %v271 = vunpack.c.l.b16 %v77
    %v272 = vunpack.c.h.b16 %v77
    %v273 = vunpack.c.l.b16 %v78
    %v274 = vunpack.c.h.b16 %v78
    %v275 = vunpack.c.l.b16 %v79
    %v276 = vunpack.c.h.b16 %v79
    %v277 = vunpack.c.l.b16 %v80
    %v278 = vunpack.c.h.b16 %v80
    %v279 = vunpack.c.l.b16 %v81
    %v280 = vunpack.c.h.b16 %v81
    %v281 = vunpack.c.l.b16 %v82
    %v282 = vunpack.c.h.b16 %v82
    %v283 = vunpack.c.l.b16 %v83
    %v284 = vunpack.c.h.b16 %v83
    %v285 = vunpack.c.l.b16 %v84
    %v286 = vunpack.c.h.b16 %v84
    %v287 = vunpack.c.l.b16 %v85
    %v288 = vunpack.c.h.b16 %v85
    %v289 = vunpack.c.l.b16 %v86
    %v290 = vunpack.c.h.b16 %v86
    %v291 = vunpack.c.l.b16 %v87
    %v292 = vunpack.c.h.b16 %v87
    %v293 = vunpack.c.l.b16 %v88
    %v294 = vunpack.c.h.b16 %v88
    %v295 = vunpack.c.l.b16 %v89
    %v296 = vunpack.c.h.b16 %v89
    %v297 = vunpack.c.l.b16 %v90
    %v298 = vunpack.c.h.b16 %v90
    %v299 = vunpack.c.l.b16 %v91
    %v300 = vunpack.c.h.b16 %v91
    %v301 = vunpack.c.l.b16 %v92
    %v302 = vunpack.c.h.b16 %v92
    %v303 = vunpack.c.l.b16 %v93
    %v304 = vunpack.c.h.b16 %v93
    %v305 = vunpack.c.l.b16 %v94
    %v306 = vunpack.c.h.b16 %v94
    %v307 = vunpack.c.l.b16 %v95
    %v308 = vunpack.c.h.b16 %v95
    %v309 = vunpack.c.l.b16 %v96
    %v310 = vunpack.c.h.b16 %v96
    %v311 = vunpack.c.l.b16 %v97
    %v312 = vunpack.c.h.b16 %v97
    %v313 = vunpack.c.l.b16 %v98
    %v314 = vunpack.c.h.b16 %v98
    %v315 = vunpack.c.l.b16 %v99
    %v316 = vunpack.c.h.b16 %v99
    %v317 = vunpack.c.l.b16 %v100
    %v318 = vunpack.c.h.b16 %v100
    %v319 = vunpack.c.l.b16 %v101
    %v320 = vunpack.c.h.b16 %v101
    %v321 = vunpack.c.l.b16 %v102
    %v322 = vunpack.c.h.b16 %v102
    %v323 = vunpack.c.l.b16 %v103
    %v324 = vunpack.c.h.b16 %v103
    %v325 = vunpack.c.l.b16 %v104
    %v326 = vunpack.c.h.b16 %v104
    %v327 = vunpack.c.l.b16 %v105
    %v328 = vunpack.c.h.b16 %v105
    %v329 = vunpack.c.l.b16 %v106
    %v330 = vunpack.c.h.b16 %v106
    %v331 = vunpack.c.l.b16 %v107
    %v332 = vunpack.c.h.b16 %v107
    %v333 = vunpack.c.l.b16 %v108
    %v334 = vunpack.c.h.b16 %v108
    %v335 = vunpack.c.l.b16 %v109
    %v336 = vunpack.c.h.b16 %v109
    %v337 = vunpack.c.l.b16 %v110
    %v338 = vunpack.c.h.b16 %v110
    %v339 = vpack.c.b16 %v213, %v211
    %v340 = vpack.c.b16 %v214, %v212
    %v341 = vpack.c.b16 %v217, %v215
    %v342 = vpack.c.b16 %v218, %v216
    %v343 = vpack.c.b16 %v221, %v219
    %v344 = vpack.c.b16 %v222, %v220
    %v345 = vpack.c.b16 %v225, %v223
    %v346 = vpack.c.b16 %v226, %v224
    %v347 = vpack.c.b16 %v229, %v227
    %v348 = vpack.c.b16 %v230, %v228
    %v349 = vpack.c.b16 %v233, %v231
    %v350 = vpack.c.b16 %v234, %v232
    %v351 = vpack.c.b16 %v237, %v235
    %v352 = vpack.c.b16 %v238, %v236
    %v353 = vpack.c.b16 %v241, %v239
    %v354 = vpack.c.b16 %v242, %v240
    %v355 = vpack.c.b16 %v245, %v243
    %v356 = vpack.c.b16 %v246, %v244
    %v357 = vpack.c.b16 %v249, %v247
    %v358 = vpack.c.b16 %v250, %v248
    %v359 = vpack.c.b16 %v253, %v251
    %v360 = vpack.c.b16 %v254, %v252
    %v361 = vpack.c.b16 %v257, %v255
    %v362 = vpack.c.b16 %v258, %v256
    %v363 = vpack.c.b16 %v261, %v259
    %v364 = vpack.c.b16 %v262, %v260
    %v365 = vpack.c.b16 %v265, %v263
    %v366 = vpack.c.b16 %v266, %v264
    %v367 = vpack.c.b16 %v269, %v267
    %v368 = vpack.c.b16 %v270, %v268
    %v369 = vpack.c.b16 %v273, %v271
    %v370 = vpack.c.b16 %v274, %v272
    %v371 = vpack.c.b16 %v277, %v275
    %v372 = vpack.c.b16 %v278, %v276
    %v373 = vpack.c.b16 %v281, %v279
    %v374 = vpack.c.b16 %v282, %v280
    %v375 = vpack.c.b16 %v285, %v283
    %v376 = vpack.c.b16 %v286, %v284
    %v377 = vpack.c.b16 %v289, %v287
    %v378 = vpack.c.b16 %v290, %v288
    %v379 = vpack.c.b16 %v293, %v291
    %v380 = vpack.c.b16 %v294, %v292
    %v381 = vpack.c.b16 %v297, %v295
    %v382 = vpack.c.b16 %v298, %v296
    %v383 = vpack.c.b16 %v301, %v299
    %v384 = vpack.c.b16 %v302, %v300
    %v385 = vpack.c.b16 %v305, %v303
    %v386 = vpack.c.b16 %v306, %v304
    %v387 = vpack.c.b16 %v309, %v307
    %v388 = vpack.c.b16 %v310, %v308
    %v389 = vpack.c.b16 %v313, %v311
    %v390 = vpack.c.b16 %v314, %v312
    %v391 = vpack.c.b16 %v317, %v315
    %v392 = vpack.c.b16 %v318, %v316
    %v393 = vpack.c.b16 %v321, %v319
    %v394 = vpack.c.b16 %v322, %v320
    %v395 = vpack.c.b16 %v325, %v323
    %v396 = vpack.c.b16 %v326, %v324
    %v397 = vpack.c.b16 %v329, %v327
    %v398 = vpack.c.b16 %v330, %v328
    %v399 = vpack.c.b16 %v333, %v331
    %v400 = vpack.c.b16 %v334, %v332
    %v401 = vpack.c.b16 %v337, %v335
    %v402 = vpack.c.b16 %v338, %v336
    %v499 = vunpack.c.l.b16 %v111
    %v500 = vunpack.c.l.b16 %v112
    %v501 = vunpack.c.l.b16 %v113
    %v502 = vunpack.c.l.b16 %v114
    %v503 = vunpack.c.l.b16 %v115
    %v504 = vunpack.c.l.b16 %v116
    %v505 = vunpack.c.l.b16 %v117
    %v506 = vunpack.c.l.b16 %v118
    %v507 = vunpack.c.l.b16 %v119
    %v508 = vunpack.c.l.b16 %v120
    %v509 = vunpack.c.l.b16 %v121
    %v510 = vunpack.c.l.b16 %v122
    %v511 = vunpack.c.l.b16 %v123
    %v512 = vunpack.c.l.b16 %v124
    %v513 = vunpack.c.l.b16 %v125
    %v514 = vunpack.c.l.b16 %v126
    %v515 = vunpack.c.l.b16 %v127
    %v516 = vunpack.c.l.b16 %v128
    %v517 = vunpack.c.l.b16 %v129
    %v518 = vunpack.c.l.b16 %v130
    %v519 = vunpack.c.l.b16 %v131
    %v520 = vunpack.c.l.b16 %v132
    %v521 = vunpack.c.l.b16 %v133
    %v522 = vunpack.c.l.b16 %v134
    %v523 = vunpack.c.l.b16 %v135
    %v524 = vunpack.c.l.b16 %v136
    %v525 = vunpack.c.l.b16 %v137
    %v526 = vunpack.c.l.b16 %v138
    %v527 = vunpack.c.l.b16 %v139
    %v528 = vunpack.c.l.b16 %v140
    %v529 = vunpack.c.l.b16 %v141
    %v530 = vunpack.c.l.b16 %v142
    %v531 = vpack.c.b16 %v500, %v499
    %v532 = vpack.c.b16 %v502, %v501
    %v533 = vpack.c.b16 %v504, %v503
    %v534 = vpack.c.b16 %v506, %v505
    %v535 = vpack.c.b16 %v508, %v507
    %v536 = vpack.c.b16 %v510, %v509
    %v537 = vpack.c.b16 %v512, %v511
    %v538 = vpack.c.b16 %v514, %v513
    %v539 = vpack.c.b16 %v516, %v515
    %v540 = vpack.c.b16 %v518, %v517
    %v541 = vpack.c.b16 %v520, %v519
    %v542 = vpack.c.b16 %v522, %v521
    %v543 = vpack.c.b16 %v524, %v523
    %v544 = vpack.c.b16 %v526, %v525
    %v545 = vpack.c.b16 %v528, %v527
    %v546 = vpack.c.b16 %v530, %v529
    %563 = vmatpush.bf16.msra.mxu0 %v538
    %564 = vmatpush.bf16.msra.mxu0 %v537
    %565 = vmatpush.bf16.msra.mxu0 %v536
    %566 = vmatpush.bf16.msra.mxu0 %v535
    %567 = vmatpush.bf16.msra.mxu0 %v534
    %568 = vmatpush.bf16.msra.mxu0 %v533
    %569 = vmatpush.bf16.msra.mxu0 %v532
    %570 = vmatpush.bf16.msra.mxu0 %v531
    %571 = vmatmul.bf16.gmra.mxu0 %v339
    %v572 = vpop.f32.mrf.mxu0
    %v573 = vadd.f32 %v145, %v572
    %v574 = vpop.f32.mrf.mxu0
    %v575 = vadd.f32 %v145, %v574
    %576 = vmatmul.bf16.gmra.mxu0 %v341
    %v577 = vpop.f32.mrf.mxu0
    %v578 = vadd.f32 %v145, %v577
    %v579 = vpop.f32.mrf.mxu0
    %v580 = vadd.f32 %v145, %v579
    %581 = vmatmul.bf16.gmra.mxu0 %v343
    %v582 = vpop.f32.mrf.mxu0
    %v583 = vadd.f32 %v145, %v582
    %v584 = vpop.f32.mrf.mxu0
    %v585 = vadd.f32 %v145, %v584
    %586 = vmatmul.bf16.gmra.mxu0 %v345
    %v587 = vpop.f32.mrf.mxu0
    %v588 = vadd.f32 %v145, %v587
    %v589 = vpop.f32.mrf.mxu0
    %v590 = vadd.f32 %v145, %v589
    %591 = vmatmul.bf16.gmra.mxu0 %v347
    %v592 = vpop.f32.mrf.mxu0
    %v593 = vadd.f32 %v145, %v592
    %v594 = vpop.f32.mrf.mxu0
    %v595 = vadd.f32 %v145, %v594
    %596 = vmatmul.bf16.gmra.mxu0 %v349
    %v597 = vpop.f32.mrf.mxu0
    %v598 = vadd.f32 %v145, %v597
    %v599 = vpop.f32.mrf.mxu0
    %v600 = vadd.f32 %v145, %v599
    %601 = vmatmul.bf16.gmra.mxu0 %v351
    %v602 = vpop.f32.mrf.mxu0
    %v603 = vadd.f32 %v145, %v602
    %v604 = vpop.f32.mrf.mxu0
    %v605 = vadd.f32 %v145, %v604
    %606 = vmatmul.bf16.gmra.mxu0 %v353
    %v607 = vpop.f32.mrf.mxu0
    %v608 = vadd.f32 %v145, %v607
    %v609 = vpop.f32.mrf.mxu0
    %v610 = vadd.f32 %v145, %v609
    %611 = vmatmul.bf16.gmra.mxu0 %v355
    %v612 = vpop.f32.mrf.mxu0
    %v613 = vadd.f32 %v145, %v612
    %v614 = vpop.f32.mrf.mxu0
    %v615 = vadd.f32 %v145, %v614
    %616 = vmatmul.bf16.gmra.mxu0 %v357
    %v617 = vpop.f32.mrf.mxu0
    %v618 = vadd.f32 %v145, %v617
    %v619 = vpop.f32.mrf.mxu0
    %v620 = vadd.f32 %v145, %v619
    %621 = vmatmul.bf16.gmra.mxu0 %v359
    %v622 = vpop.f32.mrf.mxu0
    %v623 = vadd.f32 %v145, %v622
    %v624 = vpop.f32.mrf.mxu0
    %v625 = vadd.f32 %v145, %v624
    %626 = vmatmul.bf16.gmra.mxu0 %v361
    %v627 = vpop.f32.mrf.mxu0
    %v628 = vadd.f32 %v145, %v627
    %v629 = vpop.f32.mrf.mxu0
    %v630 = vadd.f32 %v145, %v629
    %631 = vmatmul.bf16.gmra.mxu0 %v363
    %v632 = vpop.f32.mrf.mxu0
    %v633 = vadd.f32 %v145, %v632
    %v634 = vpop.f32.mrf.mxu0
    %v635 = vadd.f32 %v145, %v634
    %636 = vmatmul.bf16.gmra.mxu0 %v365
    %v637 = vpop.f32.mrf.mxu0
    %v638 = vadd.f32 %v145, %v637
    %v639 = vpop.f32.mrf.mxu0
    %v640 = vadd.f32 %v145, %v639
    %641 = vmatmul.bf16.gmra.mxu0 %v367
    %v642 = vpop.f32.mrf.mxu0
    %v643 = vadd.f32 %v145, %v642
    %v644 = vpop.f32.mrf.mxu0
    %v645 = vadd.f32 %v145, %v644
    %646 = vmatmul.bf16.gmra.mxu0 %v369
    %v647 = vpop.f32.mrf.mxu0
    %v648 = vadd.f32 %v145, %v647
    %v649 = vpop.f32.mrf.mxu0
    %v650 = vadd.f32 %v145, %v649
    %651 = vmatmul.bf16.gmra.mxu0 %v371
    %v652 = vpop.f32.mrf.mxu0
    %v653 = vadd.f32 %v145, %v652
    %v654 = vpop.f32.mrf.mxu0
    %v655 = vadd.f32 %v145, %v654
    %656 = vmatmul.bf16.gmra.mxu0 %v373
    %v657 = vpop.f32.mrf.mxu0
    %v658 = vadd.f32 %v145, %v657
    %v659 = vpop.f32.mrf.mxu0
    %v660 = vadd.f32 %v145, %v659
    %661 = vmatmul.bf16.gmra.mxu0 %v375
    %v662 = vpop.f32.mrf.mxu0
    %v663 = vadd.f32 %v145, %v662
    %v664 = vpop.f32.mrf.mxu0
    %v665 = vadd.f32 %v145, %v664
    %666 = vmatmul.bf16.gmra.mxu0 %v377
    %v667 = vpop.f32.mrf.mxu0
    %v668 = vadd.f32 %v145, %v667
    %v669 = vpop.f32.mrf.mxu0
    %v670 = vadd.f32 %v145, %v669
    %671 = vmatmul.bf16.gmra.mxu0 %v379
    %v672 = vpop.f32.mrf.mxu0
    %v673 = vadd.f32 %v145, %v672
    %v674 = vpop.f32.mrf.mxu0
    %v675 = vadd.f32 %v145, %v674
    %676 = vmatmul.bf16.gmra.mxu0 %v381
    %v677 = vpop.f32.mrf.mxu0
    %v678 = vadd.f32 %v145, %v677
    %v679 = vpop.f32.mrf.mxu0
    %v680 = vadd.f32 %v145, %v679
    %681 = vmatmul.bf16.gmra.mxu0 %v383
    %v682 = vpop.f32.mrf.mxu0
    %v683 = vadd.f32 %v145, %v682
    %v684 = vpop.f32.mrf.mxu0
    %v685 = vadd.f32 %v145, %v684
    %686 = vmatmul.bf16.gmra.mxu0 %v385
    %v687 = vpop.f32.mrf.mxu0
    %v688 = vadd.f32 %v145, %v687
    %v689 = vpop.f32.mrf.mxu0
    %v690 = vadd.f32 %v145, %v689
    %691 = vmatmul.bf16.gmra.mxu0 %v387
    %v692 = vpop.f32.mrf.mxu0
    %v693 = vadd.f32 %v145, %v692
    %v694 = vpop.f32.mrf.mxu0
    %v695 = vadd.f32 %v145, %v694
    %696 = vmatmul.bf16.gmra.mxu0 %v389
    %v697 = vpop.f32.mrf.mxu0
    %v698 = vadd.f32 %v145, %v697
    %v699 = vpop.f32.mrf.mxu0
    %v700 = vadd.f32 %v145, %v699
    %701 = vmatmul.bf16.gmra.mxu0 %v391
    %v702 = vpop.f32.mrf.mxu0
    %v703 = vadd.f32 %v145, %v702
    %v704 = vpop.f32.mrf.mxu0
    %v705 = vadd.f32 %v145, %v704
    %706 = vmatmul.bf16.gmra.mxu0 %v393
    %v707 = vpop.f32.mrf.mxu0
    %v708 = vadd.f32 %v145, %v707
    %v709 = vpop.f32.mrf.mxu0
    %v710 = vadd.f32 %v145, %v709
    %711 = vmatmul.bf16.gmra.mxu0 %v395
    %v712 = vpop.f32.mrf.mxu0
    %v713 = vadd.f32 %v145, %v712
    %v714 = vpop.f32.mrf.mxu0
    %v715 = vadd.f32 %v145, %v714
    %716 = vmatmul.bf16.gmra.mxu0 %v397
    %v717 = vpop.f32.mrf.mxu0
    %v718 = vadd.f32 %v145, %v717
    %v719 = vpop.f32.mrf.mxu0
    %v720 = vadd.f32 %v145, %v719
    %721 = vmatmul.bf16.gmra.mxu0 %v399
    %v722 = vpop.f32.mrf.mxu0
    %v723 = vadd.f32 %v145, %v722
    %v724 = vpop.f32.mrf.mxu0
    %v725 = vadd.f32 %v145, %v724
    %726 = vmatmul.bf16.gmra.mxu0 %v401
    %v727 = vpop.f32.mrf.mxu0
    %v728 = vadd.f32 %v145, %v727
    %v729 = vpop.f32.mrf.mxu0
    %v730 = vadd.f32 %v145, %v729
    %731 = vdwg.mxu0
    %732 = vmatpush.bf16.msra.mxu0 %v546
    %733 = vmatpush.bf16.msra.mxu0 %v545
    %734 = vmatpush.bf16.msra.mxu0 %v544
    %735 = vmatpush.bf16.msra.mxu0 %v543
    %736 = vmatpush.bf16.msra.mxu0 %v542
    %737 = vmatpush.bf16.msra.mxu0 %v541
    %738 = vmatpush.bf16.msra.mxu0 %v540
    %739 = vmatpush.bf16.msra.mxu0 %v539
    %740 = vmatmul.bf16.gmra.mxu0 %v340
    %v741 = vpop.f32.mrf.mxu0
    %v742 = vadd.f32 %v573, %v741
    %v743 = vpop.f32.mrf.mxu0
    %v744 = vadd.f32 %v575, %v743
    %745 = vmatmul.bf16.gmra.mxu0 %v342
    %v746 = vpop.f32.mrf.mxu0
    %v747 = vadd.f32 %v578, %v746
    %v748 = vpop.f32.mrf.mxu0
    %v749 = vadd.f32 %v580, %v748
    %750 = vmatmul.bf16.gmra.mxu0 %v344
    %v751 = vpop.f32.mrf.mxu0
    %v752 = vadd.f32 %v583, %v751
    %v753 = vpop.f32.mrf.mxu0
    %v754 = vadd.f32 %v585, %v753
    %755 = vmatmul.bf16.gmra.mxu0 %v346
    %v756 = vpop.f32.mrf.mxu0
    %v757 = vadd.f32 %v588, %v756
    %v758 = vpop.f32.mrf.mxu0
    %v759 = vadd.f32 %v590, %v758
    %760 = vmatmul.bf16.gmra.mxu0 %v348
    %v761 = vpop.f32.mrf.mxu0
    %v762 = vadd.f32 %v593, %v761
    %v763 = vpop.f32.mrf.mxu0
    %v764 = vadd.f32 %v595, %v763
    %765 = vmatmul.bf16.gmra.mxu0 %v350
    %v766 = vpop.f32.mrf.mxu0
    %v767 = vadd.f32 %v598, %v766
    %v768 = vpop.f32.mrf.mxu0
    %v769 = vadd.f32 %v600, %v768
    %770 = vmatmul.bf16.gmra.mxu0 %v352
    %v771 = vpop.f32.mrf.mxu0
    %v772 = vadd.f32 %v603, %v771
    %v773 = vpop.f32.mrf.mxu0
    %v774 = vadd.f32 %v605, %v773
    %775 = vmatmul.bf16.gmra.mxu0 %v354
    %v776 = vpop.f32.mrf.mxu0
    %v777 = vadd.f32 %v608, %v776
    %v778 = vpop.f32.mrf.mxu0
    %v779 = vadd.f32 %v610, %v778
    %780 = vmatmul.bf16.gmra.mxu0 %v356
    %v781 = vpop.f32.mrf.mxu0
    %v782 = vadd.f32 %v613, %v781
    %v783 = vpop.f32.mrf.mxu0
    %v784 = vadd.f32 %v615, %v783
    %785 = vmatmul.bf16.gmra.mxu0 %v358
    %v786 = vpop.f32.mrf.mxu0
    %v787 = vadd.f32 %v618, %v786
    %v788 = vpop.f32.mrf.mxu0
    %v789 = vadd.f32 %v620, %v788
    %790 = vmatmul.bf16.gmra.mxu0 %v360
    %v791 = vpop.f32.mrf.mxu0
    %v792 = vadd.f32 %v623, %v791
    %v793 = vpop.f32.mrf.mxu0
    %v794 = vadd.f32 %v625, %v793
    %795 = vmatmul.bf16.gmra.mxu0 %v362
    %v796 = vpop.f32.mrf.mxu0
    %v797 = vadd.f32 %v628, %v796
    %v798 = vpop.f32.mrf.mxu0
    %v799 = vadd.f32 %v630, %v798
    %800 = vmatmul.bf16.gmra.mxu0 %v364
    %v801 = vpop.f32.mrf.mxu0
    %v802 = vadd.f32 %v633, %v801
    %v803 = vpop.f32.mrf.mxu0
    %v804 = vadd.f32 %v635, %v803
    %805 = vmatmul.bf16.gmra.mxu0 %v366
    %v806 = vpop.f32.mrf.mxu0
    %v807 = vadd.f32 %v638, %v806
    %v808 = vpop.f32.mrf.mxu0
    %v809 = vadd.f32 %v640, %v808
    %810 = vmatmul.bf16.gmra.mxu0 %v368
    %v811 = vpop.f32.mrf.mxu0
    %v812 = vadd.f32 %v643, %v811
    %v813 = vpop.f32.mrf.mxu0
    %v814 = vadd.f32 %v645, %v813
    %815 = vmatmul.bf16.gmra.mxu0 %v370
    %v816 = vpop.f32.mrf.mxu0
    %v817 = vadd.f32 %v648, %v816
    %v818 = vpop.f32.mrf.mxu0
    %v819 = vadd.f32 %v650, %v818
    %820 = vmatmul.bf16.gmra.mxu0 %v372
    %v821 = vpop.f32.mrf.mxu0
    %v822 = vadd.f32 %v653, %v821
    %v823 = vpop.f32.mrf.mxu0
    %v824 = vadd.f32 %v655, %v823
    %825 = vmatmul.bf16.gmra.mxu0 %v374
    %v826 = vpop.f32.mrf.mxu0
    %v827 = vadd.f32 %v658, %v826
    %v828 = vpop.f32.mrf.mxu0
    %v829 = vadd.f32 %v660, %v828
    %830 = vmatmul.bf16.gmra.mxu0 %v376
    %v831 = vpop.f32.mrf.mxu0
    %v832 = vadd.f32 %v663, %v831
    %v833 = vpop.f32.mrf.mxu0
    %v834 = vadd.f32 %v665, %v833
    %835 = vmatmul.bf16.gmra.mxu0 %v378
    %v836 = vpop.f32.mrf.mxu0
    %v837 = vadd.f32 %v668, %v836
    %v838 = vpop.f32.mrf.mxu0
    %v839 = vadd.f32 %v670, %v838
    %840 = vmatmul.bf16.gmra.mxu0 %v380
    %v841 = vpop.f32.mrf.mxu0
    %v842 = vadd.f32 %v673, %v841
    %v843 = vpop.f32.mrf.mxu0
    %v844 = vadd.f32 %v675, %v843
    %845 = vmatmul.bf16.gmra.mxu0 %v382
    %v846 = vpop.f32.mrf.mxu0
    %v847 = vadd.f32 %v678, %v846
    %v848 = vpop.f32.mrf.mxu0
    %v849 = vadd.f32 %v680, %v848
    %850 = vmatmul.bf16.gmra.mxu0 %v384
    %v851 = vpop.f32.mrf.mxu0
    %v852 = vadd.f32 %v683, %v851
    %v853 = vpop.f32.mrf.mxu0
    %v854 = vadd.f32 %v685, %v853
    %855 = vmatmul.bf16.gmra.mxu0 %v386
    %v856 = vpop.f32.mrf.mxu0
    %v857 = vadd.f32 %v688, %v856
    %v858 = vpop.f32.mrf.mxu0
    %v859 = vadd.f32 %v690, %v858
    %860 = vmatmul.bf16.gmra.mxu0 %v388
    %v861 = vpop.f32.mrf.mxu0
    %v862 = vadd.f32 %v693, %v861
    %v863 = vpop.f32.mrf.mxu0
    %v864 = vadd.f32 %v695, %v863
    %865 = vmatmul.bf16.gmra.mxu0 %v390
    %v866 = vpop.f32.mrf.mxu0
    %v867 = vadd.f32 %v698, %v866
    %v868 = vpop.f32.mrf.mxu0
    %v869 = vadd.f32 %v700, %v868
    %870 = vmatmul.bf16.gmra.mxu0 %v392
    %v871 = vpop.f32.mrf.mxu0
    %v872 = vadd.f32 %v703, %v871
    %v873 = vpop.f32.mrf.mxu0
    %v874 = vadd.f32 %v705, %v873
    %875 = vmatmul.bf16.gmra.mxu0 %v394
    %v876 = vpop.f32.mrf.mxu0
    %v877 = vadd.f32 %v708, %v876
    %v878 = vpop.f32.mrf.mxu0
    %v879 = vadd.f32 %v710, %v878
    %880 = vmatmul.bf16.gmra.mxu0 %v396
    %v881 = vpop.f32.mrf.mxu0
    %v882 = vadd.f32 %v713, %v881
    %v883 = vpop.f32.mrf.mxu0
    %v884 = vadd.f32 %v715, %v883
    %885 = vmatmul.bf16.gmra.mxu0 %v398
    %v886 = vpop.f32.mrf.mxu0
    %v887 = vadd.f32 %v718, %v886
    %v888 = vpop.f32.mrf.mxu0
    %v889 = vadd.f32 %v720, %v888
    %890 = vmatmul.bf16.gmra.mxu0 %v400
    %v891 = vpop.f32.mrf.mxu0
    %v892 = vadd.f32 %v723, %v891
    %v893 = vpop.f32.mrf.mxu0
    %v894 = vadd.f32 %v725, %v893
    %895 = vmatmul.bf16.gmra.mxu0 %v402
    %v896 = vpop.f32.mrf.mxu0
    %v897 = vadd.f32 %v728, %v896
    %v898 = vpop.f32.mrf.mxu0
    %v899 = vadd.f32 %v730, %v898
    %900 = vdwg.mxu0
    %v901 = vmax.f32 %v742, 0.0
    %v902 = vmax.f32 %v744, 0.0
    %v903 = vmax.f32 %v747, 0.0
    %v904 = vmax.f32 %v749, 0.0
    %v905 = vmax.f32 %v752, 0.0
    %v906 = vmax.f32 %v754, 0.0
    %v907 = vmax.f32 %v757, 0.0
    %v908 = vmax.f32 %v759, 0.0
    %v909 = vmax.f32 %v762, 0.0
    %v910 = vmax.f32 %v764, 0.0
    %v911 = vmax.f32 %v767, 0.0
    %v912 = vmax.f32 %v769, 0.0
    %v913 = vmax.f32 %v772, 0.0
    %v914 = vmax.f32 %v774, 0.0
    %v915 = vmax.f32 %v777, 0.0
    %v916 = vmax.f32 %v779, 0.0
    %v917 = vmax.f32 %v782, 0.0
    %v918 = vmax.f32 %v784, 0.0
    %v919 = vmax.f32 %v787, 0.0
    %v920 = vmax.f32 %v789, 0.0
    %v921 = vmax.f32 %v792, 0.0
    %v922 = vmax.f32 %v794, 0.0
    %v923 = vmax.f32 %v797, 0.0
    %v924 = vmax.f32 %v799, 0.0
    %v925 = vmax.f32 %v802, 0.0
    %v926 = vmax.f32 %v804, 0.0
    %v927 = vmax.f32 %v807, 0.0
    %v928 = vmax.f32 %v809, 0.0
    %v929 = vmax.f32 %v812, 0.0
    %v930 = vmax.f32 %v814, 0.0
    %v931 = vmax.f32 %v817, 0.0
    %v932 = vmax.f32 %v819, 0.0
    %v933 = vmax.f32 %v822, 0.0
    %v934 = vmax.f32 %v824, 0.0
    %v935 = vmax.f32 %v827, 0.0
    %v936 = vmax.f32 %v829, 0.0
    %v937 = vmax.f32 %v832, 0.0
    %v938 = vmax.f32 %v834, 0.0
    %v939 = vmax.f32 %v837, 0.0
    %v940 = vmax.f32 %v839, 0.0
    %v941 = vmax.f32 %v842, 0.0
    %v942 = vmax.f32 %v844, 0.0
    %v943 = vmax.f32 %v847, 0.0
    %v944 = vmax.f32 %v849, 0.0
    %v945 = vmax.f32 %v852, 0.0
    %v946 = vmax.f32 %v854, 0.0
    %v947 = vmax.f32 %v857, 0.0
    %v948 = vmax.f32 %v859, 0.0
    %v949 = vmax.f32 %v862, 0.0
    %v950 = vmax.f32 %v864, 0.0
    %v951 = vmax.f32 %v867, 0.0
    %v952 = vmax.f32 %v869, 0.0
    %v953 = vmax.f32 %v872, 0.0
    %v954 = vmax.f32 %v874, 0.0
    %v955 = vmax.f32 %v877, 0.0
    %v956 = vmax.f32 %v879, 0.0
    %v957 = vmax.f32 %v882, 0.0
    %v958 = vmax.f32 %v884, 0.0
    %v959 = vmax.f32 %v887, 0.0
    %v960 = vmax.f32 %v889, 0.0
    %v961 = vmax.f32 %v892, 0.0
    %v962 = vmax.f32 %v894, 0.0
    %v963 = vmax.f32 %v897, 0.0
    %v964 = vmax.f32 %v899, 0.0
    %v965 = vpack.c.bf16 %v901, %v901
    %v966 = vpack.c.bf16 %v902, %v902
    %v967 = vpack.c.bf16 %v903, %v903
    %v968 = vpack.c.bf16 %v904, %v904
    %v969 = vpack.c.bf16 %v905, %v905
    %v970 = vpack.c.bf16 %v906, %v906
    %v971 = vpack.c.bf16 %v907, %v907
    %v972 = vpack.c.bf16 %v908, %v908
    %v973 = vpack.c.bf16 %v909, %v909
    %v974 = vpack.c.bf16 %v910, %v910
    %v975 = vpack.c.bf16 %v911, %v911
    %v976 = vpack.c.bf16 %v912, %v912
    %v977 = vpack.c.bf16 %v913, %v913
    %v978 = vpack.c.bf16 %v914, %v914
    %v979 = vpack.c.bf16 %v915, %v915
    %v980 = vpack.c.bf16 %v916, %v916
    %v981 = vpack.c.bf16 %v917, %v917
    %v982 = vpack.c.bf16 %v918, %v918
    %v983 = vpack.c.bf16 %v919, %v919
    %v984 = vpack.c.bf16 %v920, %v920
    %v985 = vpack.c.bf16 %v921, %v921
    %v986 = vpack.c.bf16 %v922, %v922
    %v987 = vpack.c.bf16 %v923, %v923
    %v988 = vpack.c.bf16 %v924, %v924
    %v989 = vpack.c.bf16 %v925, %v925
    %v990 = vpack.c.bf16 %v926, %v926
    %v991 = vpack.c.bf16 %v927, %v927
    %v992 = vpack.c.bf16 %v928, %v928
    %v993 = vpack.c.bf16 %v929, %v929
    %v994 = vpack.c.bf16 %v930, %v930
    %v995 = vpack.c.bf16 %v931, %v931
    %v996 = vpack.c.bf16 %v932, %v932
    %v997 = vpack.c.bf16 %v933, %v933
    %v998 = vpack.c.bf16 %v934, %v934
    %v999 = vpack.c.bf16 %v935, %v935
    %v1000 = vpack.c.bf16 %v936, %v936
    %v1001 = vpack.c.bf16 %v937, %v937
    %v1002 = vpack.c.bf16 %v938, %v938
    %v1003 = vpack.c.bf16 %v939, %v939
    %v1004 = vpack.c.bf16 %v940, %v940
    %v1005 = vpack.c.bf16 %v941, %v941
    %v1006 = vpack.c.bf16 %v942, %v942
    %v1007 = vpack.c.bf16 %v943, %v943
    %v1008 = vpack.c.bf16 %v944, %v944
    %v1009 = vpack.c.bf16 %v945, %v945
    %v1010 = vpack.c.bf16 %v946, %v946
    %v1011 = vpack.c.bf16 %v947, %v947
    %v1012 = vpack.c.bf16 %v948, %v948
    %v1013 = vpack.c.bf16 %v949, %v949
    %v1014 = vpack.c.bf16 %v950, %v950
    %v1015 = vpack.c.bf16 %v951, %v951
    %v1016 = vpack.c.bf16 %v952, %v952
    %v1017 = vpack.c.bf16 %v953, %v953
    %v1018 = vpack.c.bf16 %v954, %v954
    %v1019 = vpack.c.bf16 %v955, %v955
    %v1020 = vpack.c.bf16 %v956, %v956
    %v1021 = vpack.c.bf16 %v957, %v957
    %v1022 = vpack.c.bf16 %v958, %v958
    %v1023 = vpack.c.bf16 %v959, %v959
    %v1024 = vpack.c.bf16 %v960, %v960
    %v1025 = vpack.c.bf16 %v961, %v961
    %v1026 = vpack.c.bf16 %v962, %v962
    %v1027 = vpack.c.bf16 %v963, %v963
    %v1028 = vpack.c.bf16 %v964, %v964
    %1029 = vst [vmem:[#allocation7] sm:$0xf] %v965
    %1030 = vst [vmem:[#allocation7 + $0x4] sm:$0xf] %v966
    %1031 = vst [vmem:[#allocation7 + $0x8] sm:$0xf] %v967
    %1032 = vst [vmem:[#allocation7 + $0xc] sm:$0xf] %v968
    %1033 = vst [vmem:[#allocation7 + $0x10] sm:$0xf] %v969
    %1034 = vst [vmem:[#allocation7 + $0x14] sm:$0xf] %v970
    %1035 = vst [vmem:[#allocation7 + $0x18] sm:$0xf] %v971
    %1036 = vst [vmem:[#allocation7 + $0x1c] sm:$0xf] %v972
    %1037 = vst [vmem:[#allocation7 + $0x20] sm:$0xf] %v973
    %1038 = vst [vmem:[#allocation7 + $0x24] sm:$0xf] %v974
    %1039 = vst [vmem:[#allocation7 + $0x28] sm:$0xf] %v975
    %1040 = vst [vmem:[#allocation7 + $0x2c] sm:$0xf] %v976
    %1041 = vst [vmem:[#allocation7 + $0x30] sm:$0xf] %v977
    %1042 = vst [vmem:[#allocation7 + $0x34] sm:$0xf] %v978
    %1043 = vst [vmem:[#allocation7 + $0x38] sm:$0xf] %v979
    %1044 = vst [vmem:[#allocation7 + $0x3c] sm:$0xf] %v980
    %1045 = vst [vmem:[#allocation7 + $0x40] sm:$0xf] %v981
    %1046 = vst [vmem:[#allocation7 + $0x44] sm:$0xf] %v982
    %1047 = vst [vmem:[#allocation7 + $0x48] sm:$0xf] %v983
    %1048 = vst [vmem:[#allocation7 + $0x4c] sm:$0xf] %v984
    %1049 = vst [vmem:[#allocation7 + $0x50] sm:$0xf] %v985
    %1050 = vst [vmem:[#allocation7 + $0x54] sm:$0xf] %v986
    %1051 = vst [vmem:[#allocation7 + $0x58] sm:$0xf] %v987
    %1052 = vst [vmem:[#allocation7 + $0x5c] sm:$0xf] %v988
    %1053 = vst [vmem:[#allocation7 + $0x60] sm:$0xf] %v989
    %1054 = vst [vmem:[#allocation7 + $0x64] sm:$0xf] %v990
    %1055 = vst [vmem:[#allocation7 + $0x68] sm:$0xf] %v991
    %1056 = vst [vmem:[#allocation7 + $0x6c] sm:$0xf] %v992
    %1057 = vst [vmem:[#allocation7 + $0x70] sm:$0xf] %v993
    %1058 = vst [vmem:[#allocation7 + $0x74] sm:$0xf] %v994
    %1059 = vst [vmem:[#allocation7 + $0x78] sm:$0xf] %v995
    %1060 = vst [vmem:[#allocation7 + $0x7c] sm:$0xf] %v996
    %1061 = vst [vmem:[#allocation7 + $0x80] sm:$0xf] %v997
    %1062 = vst [vmem:[#allocation7 + $0x84] sm:$0xf] %v998
    %1063 = vst [vmem:[#allocation7 + $0x88] sm:$0xf] %v999
    %1064 = vst [vmem:[#allocation7 + $0x8c] sm:$0xf] %v1000
    %1065 = vst [vmem:[#allocation7 + $0x90] sm:$0xf] %v1001
    %1066 = vst [vmem:[#allocation7 + $0x94] sm:$0xf] %v1002
    %1067 = vst [vmem:[#allocation7 + $0x98] sm:$0xf] %v1003
    %1068 = vst [vmem:[#allocation7 + $0x9c] sm:$0xf] %v1004
    %1069 = vst [vmem:[#allocation7 + $0xa0] sm:$0xf] %v1005
    %1070 = vst [vmem:[#allocation7 + $0xa4] sm:$0xf] %v1006
    %1071 = vst [vmem:[#allocation7 + $0xa8] sm:$0xf] %v1007
    %1072 = vst [vmem:[#allocation7 + $0xac] sm:$0xf] %v1008
    %1073 = vst [vmem:[#allocation7 + $0xb0] sm:$0xf] %v1009
    %1074 = vst [vmem:[#allocation7 + $0xb4] sm:$0xf] %v1010
    %1075 = vst [vmem:[#allocation7 + $0xb8] sm:$0xf] %v1011
    %1076 = vst [vmem:[#allocation7 + $0xbc] sm:$0xf] %v1012
    %1077 = vst [vmem:[#allocation7 + $0xc0] sm:$0xf] %v1013
    %1078 = vst [vmem:[#allocation7 + $0xc4] sm:$0xf] %v1014
    %1079 = vst [vmem:[#allocation7 + $0xc8] sm:$0xf] %v1015
    %1080 = vst [vmem:[#allocation7 + $0xcc] sm:$0xf] %v1016
    %1081 = vst [vmem:[#allocation7 + $0xd0] sm:$0xf] %v1017
    %1082 = vst [vmem:[#allocation7 + $0xd4] sm:$0xf] %v1018
    %1083 = vst [vmem:[#allocation7 + $0xd8] sm:$0xf] %v1019
    %1084 = vst [vmem:[#allocation7 + $0xdc] sm:$0xf] %v1020
    %1085 = vst [vmem:[#allocation7 + $0xe0] sm:$0xf] %v1021
    %1086 = vst [vmem:[#allocation7 + $0xe4] sm:$0xf] %v1022
    %1087 = vst [vmem:[#allocation7 + $0xe8] sm:$0xf] %v1023
    %1088 = vst [vmem:[#allocation7 + $0xec] sm:$0xf] %v1024
    %1089 = vst [vmem:[#allocation7 + $0xf0] sm:$0xf] %v1025
    %1090 = vst [vmem:[#allocation7 + $0xf4] sm:$0xf] %v1026
    %1091 = vst [vmem:[#allocation7 + $0xf8] sm:$0xf] %v1027
    %1092 = vst [vmem:[#allocation7 + $0xfc] sm:$0xf] %v1028
    // Predicated region
    $region22: #{tpu_custom_call.1} parent=1 // pred_check
      _
    $region23: #{tpu_custom_call.1} parent=1 // pred_check_branch
      %1094 = sbr.rel (0) target = $region25
    $region24: #{tpu_custom_call.1} parent=1 // pred_region
      %1096 = vsyncadd [#allocation4], 0
      %s1097 = sshll.u32 [#allocation7], 4
      %s1098 = int_to_ptr.vmem [resolvable:$true] %s1097
      %s1099 = sshll.u32 %s3, 4
      %s1100 = int_to_ptr.hbm [resolvable:$true] %s1099
      %1105 = dma.vmem_to_hbm [thread:$0]  %s1098, 4096, %s1100, [#allocation4], 64, 64, 4
    $region25: #{tpu_custom_call.1} parent=1 // pred_fallthru
      _
    // Predicated region
    $region26: #{tpu_custom_call.1} parent=1 // pred_check
      _
    $region27: #{tpu_custom_call.1} parent=1 // pred_check_branch
      %1107 = sbr.rel (0) target = $region29
    $region28: #{tpu_custom_call.1} parent=1 // pred_region
      %1109 = dma.done [#allocation4], 4096
    $region29: #{tpu_custom_call.1} parent=1 // pred_fallthru
      _
    %1110 = vsyncpa [#allocation3], 1
    %1111 = vsyncpa [#allocation6], 1
    %1112 = vsyncpa [#allocation4], 1

</llo_original>
